<compile_context>
chip_gen: v5e
topology: v5e:2x2
jax: 0.10.0
libtpu: 0.0.40
codegen_flags: <defaults>
</compile_context>

<pallas_src>
import functools

import jax
import jax.numpy as jnp
from jax.experimental import pallas as pl
from jax.experimental.pallas import tpu as pltpu

_LANE_W = 512   # lane-dense last dim (multiple of 128) -> unmasked vld/vst
_TILE_R = 512   # 512*512 f32 tile = 1 MiB; 3 streams x 2 buffers = ~6 MiB VMEM


def _add_noise_kernel(x_ref, n_ref, o_ref, *, mean, std):
    x = x_ref[...]
    noise = n_ref[...].astype(x.dtype)
    # Fold away dead vmul/vadd for the common GaussianNoise() defaults.
    if std != 1.0:
        noise = noise * jnp.asarray(std, x.dtype)
    if mean != 0.0:
        noise = noise + jnp.asarray(mean, x.dtype)
    o_ref[...] = x + noise


def gaussian_noise(img, seed, *, mean=0.0, std=1.0):
    """img: (N, C, H, W).  Returns img + (randn(img.shape) * std + mean)."""
    orig_shape = img.shape
    orig_dtype = img.dtype
    total = img.size

    # Keep bf16 inputs in bf16 (halves HBM bytes on v6e/v7x); otherwise f32
    # noise like torch.randn.
    if jnp.issubdtype(orig_dtype, jnp.floating):
        noise_dtype = orig_dtype
    else:
        noise_dtype = jnp.float32

    # TODO(synk): on real TPU hardware, generate the noise in-kernel with
    # pltpu.prng_seed(seed + pl.program_id(0)) / pltpu.stateful_normal to drop
    # one full HBM input stream; those primitives have no CPU/interpret
    # lowering, so the noise is generated here and streamed in instead.
    key = jax.random.PRNGKey(seed)

    # Flatten to a lane-dense 2D slab, padding the tail to a full row.
    lane = _LANE_W
    rows = pl.cdiv(total, lane)
    padded = rows * lane
    flat = img.reshape(-1)
    if padded != total:
        flat = jnp.pad(flat, (0, padded - total))
    x2d = flat.reshape(rows, lane)
    noise2d = jax.random.normal(key, (rows, lane), dtype=noise_dtype)

    tile_r = _TILE_R if rows >= _TILE_R else rows
    grid = (pl.cdiv(rows, tile_r),)

    kernel = functools.partial(_add_noise_kernel, mean=float(mean), std=float(std))

    bytes_accessed = (x2d.size * x2d.dtype.itemsize
                      + noise2d.size * noise2d.dtype.itemsize
                      + padded * jnp.dtype(orig_dtype).itemsize)

    out2d = pl.pallas_call(
        kernel,
        out_shape=jax.ShapeDtypeStruct((rows, lane), orig_dtype),
        grid=grid,
        in_specs=[
            pl.BlockSpec((tile_r, lane), lambda i: (i, 0)),   # image tile
            pl.BlockSpec((tile_r, lane), lambda i: (i, 0)),   # noise tile
        ],
        out_specs=pl.BlockSpec((tile_r, lane), lambda i: (i, 0)),
        compiler_params=pltpu.CompilerParams(
            dimension_semantics=("parallel",)),
        cost_estimate=pl.CostEstimate(
            flops=total, transcendentals=0, bytes_accessed=bytes_accessed),
    )(x2d, noise2d)

    return out2d.reshape(-1)[:total].reshape(orig_shape)


if __name__ == "__main__":
    key = jax.random.PRNGKey(0)
    # Small NCHW input consistent with a CIFAR-style transform.
    x = jax.random.normal(key, (2, 4, 16, 16), dtype=jnp.float32)

    # Module params (GaussianNoise(mean=0.0, std=1.0)), deterministic in-script.
    mean, std = 0.0, 1.0

    out = gaussian_noise(x, seed=1234, mean=mean, std=std)
    out = jax.block_until_ready(out)

    assert out.shape == x.shape and out.dtype == x.dtype
    # Sanity: output differs from input (noise was added) and is finite.
    assert bool(jnp.all(jnp.isfinite(out)))
    assert float(jnp.max(jnp.abs(out - x))) > 0.0

    print("KERNEL_OK")
</pallas_src>

<mosaic_0001>
module attributes {stable_mosaic.version = 11 : i64} {
  func.func @_add_noise_kernel(%arg0: i32, %arg1: memref<4x512xf32, #tpu.memory_space<vmem>>, %arg2: memref<4x512xf32, #tpu.memory_space<vmem>>, %arg3: memref<4x512xf32, #tpu.memory_space<vmem>>) attributes {dimension_semantics = [#tpu.dimension_semantics<parallel>], iteration_bounds = array<i64: 1>, scalar_prefetch = 0 : i64, scratch_operands = 0 : i64, tpu.core_type = #tpu.core_type<tc>, window_params = [{transform_indices = @transform_0, window_bounds = array<i64: 4, 512>}, {transform_indices = @transform_1, window_bounds = array<i64: 4, 512>}, {transform_indices = @transform_2, window_bounds = array<i64: 4, 512>}]} {
    %c0 = arith.constant 0 : index
    %c0_0 = arith.constant 0 : index
    %0 = vector.load %arg1[%c0, %c0_0] : memref<4x512xf32, #tpu.memory_space<vmem>>, vector<4x512xf32>
    %c0_1 = arith.constant 0 : index
    %c0_2 = arith.constant 0 : index
    %1 = vector.load %arg2[%c0_1, %c0_2] : memref<4x512xf32, #tpu.memory_space<vmem>>, vector<4x512xf32>
    %2 = arith.addf %0, %1 : vector<4x512xf32>
    %c0_3 = arith.constant 0 : index
    %c0_4 = arith.constant 0 : index
    %3 = vector.load %arg3[%c0_3, %c0_4] : memref<4x512xf32, #tpu.memory_space<vmem>>, vector<4x512xf32>
    tpu.vector_store %arg3[%c0_3, %c0_4], %2 {strides = array<i32>} : memref<4x512xf32, #tpu.memory_space<vmem>>, vector<4x512xf32>,
    return
  }
  func.func @transform_0(%arg0: i32) -> (i32, i32) {
    %c0_i32 = arith.constant 0 : i32
    %c0_i32_0 = arith.constant 0 : i32
    return %arg0, %c0_i32 : i32, i32
  }
  func.func @transform_1(%arg0: i32) -> (i32, i32) {
    %c0_i32 = arith.constant 0 : i32
    %c0_i32_0 = arith.constant 0 : i32
    return %arg0, %c0_i32 : i32, i32
  }
  func.func @transform_2(%arg0: i32) -> (i32, i32) {
    %c0_i32 = arith.constant 0 : i32
    %c0_i32_0 = arith.constant 0 : i32
    return %arg0, %c0_i32 : i32, i32
  }
}

</mosaic_0001>

<llo_original>
// kernel: tpu_custom_call.1
$region0: #{tpu_custom_call.1}
  #allocation0 [shape = 'u32[]', space=smem, size = 0x4, offset = 0x4, fixed_abs, tag = 'smem constant byte address 0x4 - core index']
  #allocation1 [shape = 'u32[72,128]{1,0:T(1,128)}', space=vmem, size = 0x9000, scoped, tag = 'internal scratch']
  %s0 = inlined_call_operand.hbm [shape: f32[4,512], index: 0, kind: input, shape index: {}]
  %s1 = inlined_call_operand.hbm [shape: f32[4,512], index: 1, kind: input, shape index: {}]
  %s2 = inlined_call_operand.hbm [shape: f32[4,512], index: 2, kind: output, shape index: {}]
  %s3 = sld [smem:[#allocation0]]
  $region26: #{tpu_custom_call.1} parent=0
    _
  %s5 = ssub.s32 1, %s3
  %s6 = scalar_select 0, %s5, %s3
  $region1: #{tpu_custom_call.1} parent=0
    #allocation2 [shape = 'u8[8192]{0}', space=vmem, size = 0x2000, scoped, tag = 'input window, operand 0, single buffered']
    #allocation3 [shape = 's32[1]{0}', space=sflag, size = 0x4, scoped, tag = 'scoped memory for tpu_custom_call.1']
    #allocation4 [shape = 's32[1]{0}', space=sflag, size = 0x4, scoped, tag = 'scoped memory for tpu_custom_call.1']
    #allocation5 [shape = 'u8[8192]{0}', space=vmem, size = 0x2000, scoped, tag = 'input window, operand 1, single buffered']
    #allocation6 [shape = 's32[1]{0}', space=sflag, size = 0x4, scoped, tag = 'scoped memory for tpu_custom_call.1']
    #allocation7 [shape = 'u8[8192]{0}', space=vmem, size = 0x2000, scoped, tag = 'output window, operand 0, single buffered']
    %7 = vsyncpa [#allocation3], 0
    %8 = vsyncpa [#allocation6], 0
    %9 = vsyncpa [#allocation4], 0
    // Predicated region
    $region2: #{tpu_custom_call.1} parent=1 // pred_check
      _
    $region3: #{tpu_custom_call.1} parent=1 // pred_check_branch
      %11 = sbr.rel (0) target = $region5
    $region4: #{tpu_custom_call.1} parent=1 // pred_region
      %13 = vsyncadd [#allocation3], 0
      %s15 = sshll.u32 %s0, 4
      %s16 = int_to_ptr.hbm [resolvable:$true] %s15
      %s17 = sshll.u32 [#allocation2], 4
      %s18 = int_to_ptr.vmem [resolvable:$true] %s17
      %20 = dma.hbm_to_vmem [thread:$0]  %s16, 256, %s18, [#allocation3]
    $region5: #{tpu_custom_call.1} parent=1 // pred_fallthru
      _
    // Predicated region
    $region6: #{tpu_custom_call.1} parent=1 // pred_check
      _
    $region7: #{tpu_custom_call.1} parent=1 // pred_check_branch
      %22 = sbr.rel (0) target = $region9
    $region8: #{tpu_custom_call.1} parent=1 // pred_region
      %24 = vsyncadd [#allocation6], 0
      %s26 = sshll.u32 %s1, 4
      %s27 = int_to_ptr.hbm [resolvable:$true] %s26
      %s28 = sshll.u32 [#allocation5], 4
      %s29 = int_to_ptr.vmem [resolvable:$true] %s28
      %31 = dma.hbm_to_vmem [thread:$0]  %s27, 256, %s29, [#allocation6]
    $region9: #{tpu_custom_call.1} parent=1 // pred_fallthru
      _
    // Predicated region
    $region10: #{tpu_custom_call.1} parent=1 // pred_check
      _
    $region11: #{tpu_custom_call.1} parent=1 // pred_check_branch
      %33 = sbr.rel (0) target = $region13
    $region12: #{tpu_custom_call.1} parent=1 // pred_region
      %35 = dma.done [#allocation3], 256
    $region13: #{tpu_custom_call.1} parent=1 // pred_fallthru
      _
    // Predicated region
    $region14: #{tpu_custom_call.1} parent=1 // pred_check
      _
    $region15: #{tpu_custom_call.1} parent=1 // pred_check_branch
      %37 = sbr.rel (0) target = $region17
    $region16: #{tpu_custom_call.1} parent=1 // pred_region
      %39 = dma.done [#allocation6], 256
    $region17: #{tpu_custom_call.1} parent=1 // pred_fallthru
      _
    %v40 = vld [vmem:[#allocation2] sm:$0xff]
    %v41 = vld [vmem:[#allocation2 + $0x8] sm:$0xff]
    %v42 = vld [vmem:[#allocation5] sm:$0xff]
    %v43 = vld [vmem:[#allocation5 + $0x8] sm:$0xff]
    %v44 = vadd.f32 %v40, %v42
    %v45 = vadd.f32 %v41, %v43
    %46 = vst [vmem:[#allocation7] sm:$0xff] %v44
    %47 = vst [vmem:[#allocation7 + $0x8] sm:$0xff] %v45
    // Predicated region
    $region18: #{tpu_custom_call.1} parent=1 // pred_check
      _
    $region19: #{tpu_custom_call.1} parent=1 // pred_check_branch
      %49 = sbr.rel (0) target = $region21
    $region20: #{tpu_custom_call.1} parent=1 // pred_region
      %51 = vsyncadd [#allocation4], 0
      %s53 = sshll.u32 [#allocation7], 4
      %s54 = int_to_ptr.vmem [resolvable:$true] %s53
      %s55 = sshll.u32 %s2, 4
      %s56 = int_to_ptr.hbm [resolvable:$true] %s55
      %58 = dma.vmem_to_hbm [thread:$0]  %s54, 256, %s56, [#allocation4]
    $region21: #{tpu_custom_call.1} parent=1 // pred_fallthru
      _
    // Predicated region
    $region22: #{tpu_custom_call.1} parent=1 // pred_check
      _
    $region23: #{tpu_custom_call.1} parent=1 // pred_check_branch
      %60 = sbr.rel (0) target = $region25
    $region24: #{tpu_custom_call.1} parent=1 // pred_region
      %62 = dma.done [#allocation4], 256
    $region25: #{tpu_custom_call.1} parent=1 // pred_fallthru
      _
    %63 = vsyncpa [#allocation3], 1
    %64 = vsyncpa [#allocation6], 1
    %65 = vsyncpa [#allocation4], 1

</llo_original>
